<compile_context>
chip_gen: v5e
topology: v5e:2x2
jax: 0.10.0
libtpu: 0.0.40
codegen_flags: <defaults>
</compile_context>

<pallas_src>
import functools

import jax
import jax.numpy as jnp
from jax.experimental import pallas as pl
from jax.experimental.pallas import tpu as pltpu

LANES = 128


def policy_kernel(x_ref, w1_ref, b1_ref, w2_ref, b2_ref, o_ref, *, a_dim):
    # x_ref: [TB, S] f32 | w1_ref: [S, H] bf16 | b1_ref: [1, H] f32
    # w2_ref: [H, A_pad] bf16 | b2_ref: [1, A_pad] f32 (padded lanes = -1e30)
    # o_ref: [TB, A] f32
    xb = x_ref[...].astype(jnp.bfloat16)                       # VPU cast (slack)
    # fc1 + ReLU (bf16 MXU matmul, f32 accumulate)
    h = jnp.dot(xb, w1_ref[...], preferred_element_type=jnp.float32)
    h = jnp.maximum(h + b1_ref[...], 0.0)                      # [TB, H] f32
    # fc2 (padded action lanes carry -1e30 bias -> drop out of the softmax)
    logits = jnp.dot(h.astype(jnp.bfloat16), w2_ref[...],
                     preferred_element_type=jnp.float32)
    logits = logits + b2_ref[...]                              # [TB, A_pad] f32
    # numerically-stable softmax over the last axis (== torch dim=1 for 2D x)
    m = jnp.max(logits, axis=-1, keepdims=True)
    e = jnp.exp(logits - m)
    denom = jnp.sum(e, axis=-1, keepdims=True)
    probs = e * pl.reciprocal(denom, approx=True)              # [TB, A_pad] f32
    # narrow store: only the real action columns hit HBM
    o_ref[...] = probs[:, :a_dim].astype(o_ref.dtype)


def prepare_params(w1, b1, w2, b2):
    """One-time weight preparation (call once at init, NOT per forward step).

    Pads the action dim to a full 128-lane tile (zero weight columns, -1e30
    bias in f32 so padded logits vanish in the softmax) and casts matmul
    operands to bf16. Biases stay f32.
    """
    s_dim, h_dim = w1.shape
    a_dim = w2.shape[1]
    a_pad = pl.cdiv(a_dim, LANES) * LANES
    w2p = jnp.zeros((h_dim, a_pad), jnp.float32).at[:, :a_dim].set(
        w2.astype(jnp.float32))
    b2p = jnp.full((1, a_pad), -1e30, jnp.float32).at[:, :a_dim].set(
        b2.reshape(1, a_dim).astype(jnp.float32))
    return dict(
        w1=w1.astype(jnp.bfloat16),
        b1=b1.reshape(1, h_dim).astype(jnp.float32),
        w2=w2p.astype(jnp.bfloat16),     # zero pad columns stay exactly 0 in bf16
        b2=b2p,                          # pad bias kept f32 (-1e30, not -inf)
        a_dim=a_dim,                     # static python int
    )


def _round_up(n, m):
    return ((n + m - 1) // m) * m


def _pick_tb(batch, block_b):
    tb = max(8, min(block_b, _round_up(batch, 8)))
    tb = (tb // 8) * 8
    # v7x has 2 TensorCores: ensure the "parallel" batch axis has >= 2 grid
    # steps for non-tiny batches (harmless on single-TC v5e/v6e).
    if batch >= 32 and pl.cdiv(batch, tb) < 2:
        tb = max(8, _round_up(pl.cdiv(batch, 2), 8))
    return tb


def policy_net_forward(x, params, *, block_b=2048):
    """x: [B, S] f32 (or bf16); params from prepare_params(). Returns [B, A] f32 probs."""
    b, s_dim = x.shape
    h_dim = params["w1"].shape[1]
    a_pad = params["w2"].shape[1]
    a_dim = params["a_dim"]

    tb = _pick_tb(b, block_b)
    grid = (pl.cdiv(b, tb),)

    cost = pl.CostEstimate(
        flops=2 * b * (s_dim * h_dim + h_dim * a_pad),
        transcendentals=b * a_pad,
        bytes_accessed=(x.size * x.dtype.itemsize
                        + params["w1"].size * 2 + params["w2"].size * 2
                        + params["b1"].size * 4 + params["b2"].size * 4
                        + b * a_dim * 4),
    )

    kernel = functools.partial(policy_kernel, a_dim=a_dim)
    return pl.pallas_call(
        kernel,
        out_shape=jax.ShapeDtypeStruct((b, a_dim), jnp.float32),
        grid=grid,
        in_specs=[
            pl.BlockSpec((tb, s_dim), lambda i: (i, 0)),       # x tile streams
            pl.BlockSpec((s_dim, h_dim), lambda i: (0, 0)),    # weights resident
            pl.BlockSpec((1, h_dim), lambda i: (0, 0)),
            pl.BlockSpec((h_dim, a_pad), lambda i: (0, 0)),
            pl.BlockSpec((1, a_pad), lambda i: (0, 0)),
        ],
        out_specs=pl.BlockSpec((tb, a_dim), lambda i: (i, 0)), # narrow output
        compiler_params=pltpu.CompilerParams(
            dimension_semantics=("parallel",),                 # megacore-friendly
        ),
        cost_estimate=cost,
    )(x, params["w1"], params["b1"], params["w2"], params["b2"])


def init_params(key, state_dim, hidden_dim, action_dim):
    """Deterministic init mimicking torch.nn.Linear default (uniform +/- 1/sqrt(fan_in))."""
    k1, k2, k3, k4 = jax.random.split(key, 4)
    bound1 = 1.0 / (state_dim ** 0.5)
    bound2 = 1.0 / (hidden_dim ** 0.5)
    # Stored as [in, out] (transpose of torch's [out, in]) for direct x @ W.
    w1 = jax.random.uniform(k1, (state_dim, hidden_dim), jnp.float32, -bound1, bound1)
    b1 = jax.random.uniform(k2, (1, hidden_dim), jnp.float32, -bound1, bound1)
    w2 = jax.random.uniform(k3, (hidden_dim, action_dim), jnp.float32, -bound2, bound2)
    b2 = jax.random.uniform(k4, (1, action_dim), jnp.float32, -bound2, bound2)
    return w1, b1, w2, b2


if __name__ == "__main__":
    key = jax.random.PRNGKey(0)
    kx, kp = jax.random.split(key)

    batch = 8
    state_dim = 16
    hidden_dim = 32
    action_dim = 4

    x = jax.random.normal(kx, (batch, state_dim), dtype=jnp.float32)
    w1, b1, w2, b2 = init_params(kp, state_dim, hidden_dim, action_dim)

    params = prepare_params(w1, b1, w2, b2)    # one-time weight prep (hoisted)

    probs = policy_net_forward(x, params)
    probs = jax.block_until_ready(probs)

    # pure-JAX f32 reference; looser tolerance because the kernel uses bf16
    # matmul inputs and an approx reciprocal.
    ref = jax.nn.softmax(jnp.maximum(x @ w1 + b1, 0.0) @ w2 + b2, axis=1)
    assert probs.shape == (batch, action_dim)
    assert jnp.allclose(probs, ref, atol=2e-2, rtol=2e-2)
    assert jnp.allclose(jnp.sum(probs, axis=1), 1.0, atol=2e-2)

    print("KERNEL_OK")
</pallas_src>

<mosaic_0001>
module attributes {stable_mosaic.version = 11 : i64} {
  func.func @policy_kernel(%arg0: i32, %arg1: memref<8x16xf32, #tpu.memory_space<vmem>>, %arg2: memref<16x32xbf16, #tpu.memory_space<vmem>>, %arg3: memref<1x32xf32, #tpu.memory_space<vmem>>, %arg4: memref<32x128xbf16, #tpu.memory_space<vmem>>, %arg5: memref<1x128xf32, #tpu.memory_space<vmem>>, %arg6: memref<8x4xf32, #tpu.memory_space<vmem>>) attributes {dimension_semantics = [#tpu.dimension_semantics<parallel>], iteration_bounds = array<i64: 1>, scalar_prefetch = 0 : i64, scratch_operands = 0 : i64, tpu.core_type = #tpu.core_type<tc>, window_params = [{transform_indices = @transform_0, window_bounds = array<i64: 8, 16>}, {pipeline_mode = #tpu.pipeline_mode<synchronous>, transform_indices = @transform_1, window_bounds = array<i64: 16, 32>}, {pipeline_mode = #tpu.pipeline_mode<synchronous>, transform_indices = @transform_2, window_bounds = array<i64: 1, 32>}, {pipeline_mode = #tpu.pipeline_mode<synchronous>, transform_indices = @transform_3, window_bounds = array<i64: 32, 128>}, {pipeline_mode = #tpu.pipeline_mode<synchronous>, transform_indices = @transform_4, window_bounds = array<i64: 1, 128>}, {transform_indices = @transform_5, window_bounds = array<i64: 8, 4>}]} {
    %c0 = arith.constant 0 : index
    %c0_0 = arith.constant 0 : index
    %0 = vector.load %arg1[%c0, %c0_0] : memref<8x16xf32, #tpu.memory_space<vmem>>, vector<8x16xf32>
    %1 = arith.truncf %0 : vector<8x16xf32> to vector<8x16xbf16>
    %c0_1 = arith.constant 0 : index
    %c0_2 = arith.constant 0 : index
    %2 = vector.load %arg2[%c0_1, %c0_2] : memref<16x32xbf16, #tpu.memory_space<vmem>>, vector<16x32xbf16>
    %cst = arith.constant dense<0.000000e+00> : vector<8x32xf32>
    %3 = tpu.matmul %1, %2, %cst {dimension_numbers = #tpu.dot_dimension_numbers<[1], [0], [0], [1], [0, 0, 1, 1], [], []>} : vector<8x16xbf16>, vector<16x32xbf16>, vector<8x32xf32> -> vector<8x32xf32>
    %c0_3 = arith.constant 0 : index
    %c0_4 = arith.constant 0 : index
    %4 = vector.load %arg3[%c0_3, %c0_4] : memref<1x32xf32, #tpu.memory_space<vmem>>, vector<1x32xf32>
    %5 = vector.broadcast %4 : vector<1x32xf32> to vector<8x32xf32>
    %6 = arith.addf %3, %5 : vector<8x32xf32>
    %cst_5 = arith.constant 0.000000e+00 : f32
    %7 = vector.broadcast %cst_5 : f32 to vector<8x32xf32>
    %8 = arith.maximumf %6, %7 : vector<8x32xf32>
    %9 = arith.truncf %8 : vector<8x32xf32> to vector<8x32xbf16>
    %c0_6 = arith.constant 0 : index
    %c0_7 = arith.constant 0 : index
    %10 = vector.load %arg4[%c0_6, %c0_7] : memref<32x128xbf16, #tpu.memory_space<vmem>>, vector<32x128xbf16>
    %cst_8 = arith.constant dense<0.000000e+00> : vector<8x128xf32>
    %11 = tpu.matmul %9, %10, %cst_8 {dimension_numbers = #tpu.dot_dimension_numbers<[1], [0], [0], [1], [0, 0, 1, 1], [], []>} : vector<8x32xbf16>, vector<32x128xbf16>, vector<8x128xf32> -> vector<8x128xf32>
    %c0_9 = arith.constant 0 : index
    %c0_10 = arith.constant 0 : index
    %12 = vector.load %arg5[%c0_9, %c0_10] : memref<1x128xf32, #tpu.memory_space<vmem>>, vector<1x128xf32>
    %13 = vector.broadcast %12 : vector<1x128xf32> to vector<8x128xf32>
    %14 = arith.addf %11, %13 : vector<8x128xf32>
    %cst_11 = arith.constant dense<0xFF800000> : vector<8xf32>
    %15 = vector.multi_reduction <maximumf>, %14, %cst_11 [1] : vector<8x128xf32> to vector<8xf32>
    %16 = vector.shape_cast %15 : vector<8xf32> to vector<8x1xf32>
    %17 = vector.broadcast %16 : vector<8x1xf32> to vector<8x128xf32>
    %18 = arith.subf %14, %17 : vector<8x128xf32>
    %19 = math.exp %18 : vector<8x128xf32>
    %cst_12 = arith.constant dense<0.000000e+00> : vector<8xf32>
    %20 = vector.multi_reduction <add>, %19, %cst_12 [1] : vector<8x128xf32> to vector<8xf32>
    %21 = vector.shape_cast %20 : vector<8xf32> to vector<8x1xf32>
    %22 = tpu.reciprocal %21 {approx = true} : vector<8x1xf32> -> vector<8x1xf32>
    %23 = vector.broadcast %22 : vector<8x1xf32> to vector<8x128xf32>
    %24 = arith.mulf %19, %23 : vector<8x128xf32>
    %25 = vector.extract_strided_slice %24 {offsets = [0, 0], sizes = [8, 4], strides = [1, 1]} : vector<8x128xf32> to vector<8x4xf32>
    %c0_13 = arith.constant 0 : index
    %c0_14 = arith.constant 0 : index
    %26 = vector.load %arg6[%c0_13, %c0_14] : memref<8x4xf32, #tpu.memory_space<vmem>>, vector<8x4xf32>
    tpu.vector_store %arg6[%c0_13, %c0_14], %25 {strides = array<i32>} : memref<8x4xf32, #tpu.memory_space<vmem>>, vector<8x4xf32>,
    return
  }
  func.func @transform_0(%arg0: i32) -> (i32, i32) {
    %c0_i32 = arith.constant 0 : i32
    %c0_i32_0 = arith.constant 0 : i32
    return %arg0, %c0_i32 : i32, i32
  }
  func.func @transform_1(%arg0: i32) -> (i32, i32) {
    %c0_i32 = arith.constant 0 : i32
    %c0_i32_0 = arith.constant 0 : i32
    %c0_i32_1 = arith.constant 0 : i32
    return %c0_i32, %c0_i32_0 : i32, i32
  }
  func.func @transform_2(%arg0: i32) -> (i32, i32) {
    %c0_i32 = arith.constant 0 : i32
    %c0_i32_0 = arith.constant 0 : i32
    %c0_i32_1 = arith.constant 0 : i32
    return %c0_i32, %c0_i32_0 : i32, i32
  }
  func.func @transform_3(%arg0: i32) -> (i32, i32) {
    %c0_i32 = arith.constant 0 : i32
    %c0_i32_0 = arith.constant 0 : i32
    %c0_i32_1 = arith.constant 0 : i32
    return %c0_i32, %c0_i32_0 : i32, i32
  }
  func.func @transform_4(%arg0: i32) -> (i32, i32) {
    %c0_i32 = arith.constant 0 : i32
    %c0_i32_0 = arith.constant 0 : i32
    %c0_i32_1 = arith.constant 0 : i32
    return %c0_i32, %c0_i32_0 : i32, i32
  }
  func.func @transform_5(%arg0: i32) -> (i32, i32) {
    %c0_i32 = arith.constant 0 : i32
    %c0_i32_0 = arith.constant 0 : i32
    return %arg0, %c0_i32 : i32, i32
  }
}

</mosaic_0001>

<llo_original>
// kernel: tpu_custom_call.1
$region0: #{tpu_custom_call.1}
  #allocation0 [shape = 'u32[]', space=smem, size = 0x4, offset = 0x4, fixed_abs, tag = 'smem constant byte address 0x4 - core index']
  #allocation1 [shape = 'u32[72,128]{1,0:T(1,128)}', space=vmem, size = 0x9000, scoped, tag = 'internal scratch']
  %s0 = inlined_call_operand.hbm [shape: f32[8,16], index: 0, kind: input, shape index: {}]
  %s1 = inlined_call_operand.hbm [shape: bf16[16,32], index: 1, kind: input, shape index: {}]
  %s2 = inlined_call_operand.vmem [shape: f32[1,32], index: 2, kind: input, shape index: {}]
  %s3 = inlined_call_operand.hbm [shape: bf16[32,128], index: 3, kind: input, shape index: {}]
  %s4 = inlined_call_operand.vmem [shape: f32[1,128], index: 4, kind: input, shape index: {}]
  %s5 = inlined_call_operand.vmem [shape: f32[8,4], index: 5, kind: output, shape index: {}]
  %s6 = sld [smem:[#allocation0]]
  $region42: #{tpu_custom_call.1} parent=0
    _
  %s8 = ssub.s32 1, %s6
  %s9 = scalar_select 0, %s8, %s6
  $region1: #{tpu_custom_call.1} parent=0
    #allocation2 [shape = 'u8[4096]{0}', space=vmem, size = 0x1000, scoped, tag = 'input window, operand 0, single buffered']
    #allocation3 [shape = 's32[1]{0}', space=sflag, size = 0x4, scoped, tag = 'scoped memory for tpu_custom_call.1']
    #allocation4 [shape = 'u8[4096]{0}', space=vmem, size = 0x1000, scoped, tag = 'input window, operand 1, single buffered']
    #allocation5 [shape = 's32[1]{0}', space=sflag, size = 0x4, scoped, tag = 'scoped memory for tpu_custom_call.1']
    #allocation6 [shape = 'u8[8192]{0}', space=vmem, size = 0x2000, scoped, tag = 'input window, operand 3, single buffered']
    %10 = vsyncpa [#allocation3], 0
    %11 = vsyncpa [#allocation5], 0
    // Predicated region
    $region2: #{tpu_custom_call.1} parent=1 // pred_check
      _
    $region3: #{tpu_custom_call.1} parent=1 // pred_check_branch
      %13 = sbr.rel (0) target = $region5
    $region4: #{tpu_custom_call.1} parent=1 // pred_region
      %15 = vsyncadd [#allocation3], 0
      %s17 = sshll.u32 %s0, 4
      %s18 = int_to_ptr.hbm [resolvable:$true] %s17
      %s19 = sshll.u32 [#allocation2], 4
      %s20 = int_to_ptr.vmem [resolvable:$true] %s19
      %22 = dma.hbm_to_vmem [thread:$0]  %s18, 128, %s20, [#allocation3]
    $region5: #{tpu_custom_call.1} parent=1 // pred_fallthru
      _
    // Predicated region
    $region6: #{tpu_custom_call.1} parent=1 // pred_check
      _
    $region7: #{tpu_custom_call.1} parent=1 // pred_check_branch
      %24 = sbr.rel (0) target = $region9
    $region8: #{tpu_custom_call.1} parent=1 // pred_region
      %26 = vsyncadd [#allocation5], 0
      %s27 = sshll.u32 %s1, 4
      %s28 = int_to_ptr.hbm [resolvable:$true] %s27
      %s29 = sshll.u32 [#allocation4], 4
      %s30 = int_to_ptr.vmem [resolvable:$true] %s29
      %35 = dma.hbm_to_vmem [thread:$0]  %s28, 128, %s30, [#allocation5], 64, 64, 4
    $region9: #{tpu_custom_call.1} parent=1 // pred_fallthru
      _
    // Predicated region
    $region10: #{tpu_custom_call.1} parent=1 // pred_check
      _
    $region11: #{tpu_custom_call.1} parent=1 // pred_check_branch
      %37 = sbr.rel (0) target = $region13
    $region12: #{tpu_custom_call.1} parent=1 // pred_region
      _
    $region13: #{tpu_custom_call.1} parent=1 // pred_fallthru
      _
    // Predicated region
    $region14: #{tpu_custom_call.1} parent=1 // pred_check
      _
    $region15: #{tpu_custom_call.1} parent=1 // pred_check_branch
      %39 = sbr.rel (0) target = $region17
    $region16: #{tpu_custom_call.1} parent=1 // pred_region
      %41 = vsyncadd [#allocation5], 0
      %s42 = sshll.u32 %s3, 4
      %s43 = int_to_ptr.hbm [resolvable:$true] %s42
      %s44 = sshll.u32 [#allocation6], 4
      %s45 = int_to_ptr.vmem [resolvable:$true] %s44
      %50 = dma.hbm_to_vmem [thread:$0]  %s43, 256, %s45, [#allocation5], 64, 64, 4
    $region17: #{tpu_custom_call.1} parent=1 // pred_fallthru
      _
    // Predicated region
    $region18: #{tpu_custom_call.1} parent=1 // pred_check
      _
    $region19: #{tpu_custom_call.1} parent=1 // pred_check_branch
      %52 = sbr.rel (0) target = $region21
    $region20: #{tpu_custom_call.1} parent=1 // pred_region
      _
    $region21: #{tpu_custom_call.1} parent=1 // pred_fallthru
      _
    // Predicated region
    $region22: #{tpu_custom_call.1} parent=1 // pred_check
      _
    $region23: #{tpu_custom_call.1} parent=1 // pred_check_branch
      %54 = sbr.rel (0) target = $region25
    $region24: #{tpu_custom_call.1} parent=1 // pred_region
      %56 = dma.done [#allocation3], 128
    $region25: #{tpu_custom_call.1} parent=1 // pred_fallthru
      _
    // Predicated region
    $region26: #{tpu_custom_call.1} parent=1 // pred_check
      _
    $region27: #{tpu_custom_call.1} parent=1 // pred_check_branch
      %58 = sbr.rel (0) target = $region29
    $region28: #{tpu_custom_call.1} parent=1 // pred_region
      %60 = dma.done [#allocation5], 128
    $region29: #{tpu_custom_call.1} parent=1 // pred_fallthru
      _
    // Predicated region
    $region30: #{tpu_custom_call.1} parent=1 // pred_check
      _
    $region31: #{tpu_custom_call.1} parent=1 // pred_check_branch
      %62 = sbr.rel (0) target = $region33
    $region32: #{tpu_custom_call.1} parent=1 // pred_region
      %64 = dma.done [#allocation5], 256
    $region33: #{tpu_custom_call.1} parent=1 // pred_fallthru
      _
    %v66 = vld [vmem:[#allocation2] sm:$0xff]
    %v67 = vpack.c.bf16 %v66, %v66
    %v68 = vld [vmem:[#allocation4] sm:$0xf]
    %v69 = vld [vmem:[#allocation4 + $0x4] sm:$0xf]
    %v70 = vld [vmem:[%s2] sm:$0x1]
    %v72 = vperm.slane %v70, 0
    %v76 = vunpack.c.l.b16 %v68
    %v77 = vunpack.c.l.b16 %v69
    %v78 = vpack.c.b16 %v77, %v76
    %vm80 = vcmask 130048
    %v82 = vsel %vm80, %v67, 0
    %84 = vmatpush.bf16.msra.mxu0 0
    %85 = vmatpush.bf16.msra.mxu0 0
    %86 = vmatpush.bf16.msra.mxu0 0
    %87 = vmatpush.bf16.msra.mxu0 0
    %88 = vmatpush.bf16.msra.mxu0 0
    %89 = vmatpush.bf16.msra.mxu0 0
    %90 = vmatpush.bf16.msra.mxu0 0
    %91 = vmatpush.bf16.msra.mxu0 %v78
    %92 = vmatmul.bf16.gmra.mxu0 %v82
    %v93 = vpop.f32.mrf.mxu0
    %v94 = vadd.f32 %v72, %v93
    %v95 = vpop.f32.mrf.mxu0
    %96 = vdwg.mxu0
    %v97 = vmax.f32 %v94, 0.0
    %v98 = vpack.c.bf16 %v97, %v97
    %v99 = vld [vmem:[#allocation6] sm:$0xf]
    %v100 = vld [vmem:[#allocation6 + $0x4] sm:$0xf]
    %v101 = vld [vmem:[#allocation6 + $0x8] sm:$0xf]
    %v102 = vld [vmem:[#allocation6 + $0xc] sm:$0xf]
    %v103 = vld [vmem:[%s4] sm:$0x1]
    %v105 = vperm.slane %v103, 0
    %v111 = vunpack.c.l.b16 %v99
    %v112 = vunpack.c.l.b16 %v100
    %v113 = vunpack.c.l.b16 %v101
    %v114 = vunpack.c.l.b16 %v102
    %v115 = vpack.c.b16 %v112, %v111
    %v116 = vpack.c.b16 %v114, %v113
    %vm119 = vcmask 261120
    %v121 = vsel %vm119, %v98, 0
    %123 = vmatpush.bf16.msra.mxu0 0
    %124 = vmatpush.bf16.msra.mxu0 0
    %125 = vmatpush.bf16.msra.mxu0 0
    %126 = vmatpush.bf16.msra.mxu0 0
    %127 = vmatpush.bf16.msra.mxu0 0
    %128 = vmatpush.bf16.msra.mxu0 0
    %129 = vmatpush.bf16.msra.mxu0 %v116
    %130 = vmatpush.bf16.msra.mxu0 %v115
    %131 = vmatmul.bf16.gmra.mxu0 %v121
    %v132 = vpop.f32.mrf.mxu0
    %v133 = vadd.f32 %v105, %v132
    %v134 = vpop.f32.mrf.mxu0
    %135 = vdwg.mxu0
    %136 = vmax.xlane.f32.xlu0 %v133
    %v137 = vpop.xlane.xlu0 %136
    %v138 = vsub.f32 %v133, %v137
    %v139 = vmul.f32 %v138, 1.442695
    %v140 = vpow.pop %v139
    %141 = vadd.xlane.f32.xlu0 %v140
    %v142 = vpop.xlane.xlu0 %141
    %v143 = vrcp.pop %v142
    %v144 = vmul.f32 %v140, %v143
    %vm145 = vcmask 31744
    %146 = vst.msk [vmem:[%s5] sm:$0xff] %vm145, %v144
    // Predicated region
    $region34: #{tpu_custom_call.1} parent=1 // pred_check
      _
    $region35: #{tpu_custom_call.1} parent=1 // pred_check_branch
      %148 = sbr.rel (0) target = $region37
    $region36: #{tpu_custom_call.1} parent=1 // pred_region
      _
    $region37: #{tpu_custom_call.1} parent=1 // pred_fallthru
      _
    // Predicated region
    $region38: #{tpu_custom_call.1} parent=1 // pred_check
      _
    $region39: #{tpu_custom_call.1} parent=1 // pred_check_branch
      %150 = sbr.rel (0) target = $region41
    $region40: #{tpu_custom_call.1} parent=1 // pred_region
      _
    $region41: #{tpu_custom_call.1} parent=1 // pred_fallthru
      _
    %151 = vsyncpa [#allocation3], 1
    %152 = vsyncpa [#allocation5], 1

</llo_original>
